<compile_context>
chip_gen: v7x
topology: tpu7x:2x2x1
jax: 0.10.0
libtpu: 0.0.40
codegen_flags: <defaults>
</compile_context>

<pallas_src>
from functools import partial

import jax
import jax.numpy as jnp
from jax.experimental import pallas as pl
from jax.experimental.pallas import tpu as pltpu


def _round_up(x, m):
    return (x + m - 1) // m * m


def _convblock_kernel(x_ref, w_ref, shift_ref, o_ref, *, Cp, Lp, taps):
    # x_ref     : (1, stride*Cp, Lq_p) bf16  stride-folded input: row r*Cp+c, lane q
    #             holds x_pad[b, c, q*stride + r]
    # w_ref     : (K, Op, Cp)          bf16  per-tap weights with BN scale folded in
    # shift_ref : (Op, 1)              f32   folded shift = beta + (bias - mean) * scale
    # o_ref     : (1, Op, Lp)          f32
    acc = None
    for k, (q_k, r_k) in enumerate(taps):
        # static contiguous slice: tap k reads channel group r_k, lanes [q_k, q_k + Lp)
        xk = x_ref[0, r_k * Cp:(r_k + 1) * Cp, q_k:q_k + Lp]          # (Cp, Lp) bf16
        pk = jnp.dot(w_ref[k], xk, preferred_element_type=jnp.float32)  # (Op, Lp) f32, MXU
        acc = pk if acc is None else acc + pk
    # BN shift + ReLU fused on the VPU, f32 epilogue, lane-dense unmasked store.
    o_ref[0] = jnp.maximum(acc + shift_ref[...], 0.0)


def convblock_forward(x, wc, bc, gamma, beta, run_mean, run_var,
                      *, stride=1, dilation=1, eps=1e-5):
    """x: (B, C, L) f32 -> (B, O, L_out) f32, matching ConvBlock.forward (BN eval mode)."""
    B, C, L = x.shape
    O, _, K = wc.shape

    # --- TF-"same" padding, exactly as conv1d_same_padding computes it ---
    pad_total = (L - 1) * stride - L + dilation * (K - 1) + 1
    pad_left = pad_total // 2                       # odd -> the extra pad goes right
    L_eff = L + pad_total
    L_out = (L_eff - dilation * (K - 1) - 1) // stride + 1   # == L for this module

    # --- fold conv bias + BatchNorm1d (eval, running stats) ---
    scale = gamma / jnp.sqrt(run_var + eps)                  # (O,)
    shift = beta + (bc - run_mean) * scale                   # (O,)
    w_scaled = wc * scale[:, None, None]                     # scale folded into weights

    # --- sublane/lane padding: O, C -> multiples of 8 (sublanes), L_out -> multiple of 128 ---
    Cp = _round_up(C, 8)
    Op = _round_up(O, 8)
    Lp = _round_up(L_out, 128)

    # per-tap offsets in the stride-folded layout:  k*dilation = q_k*stride + r_k
    taps = tuple(divmod(k * dilation, stride) for k in range(K))
    q_max = ((K - 1) * dilation) // stride
    Lq_p = _round_up(q_max + Lp, 128)              # folded lane extent (covers the halo)

    # --- build the stride-folded, channel-padded input: one pass over x, no im2col ---
    # xr[b, r*Cp + c, q] = x_pad[b, c, q*stride + r]
    x_pad = jnp.pad(x, ((0, 0), (0, 0), (pad_left, Lq_p * stride - L - pad_left)))
    xr = x_pad.reshape(B, C, Lq_p, stride)         # [b, c, q, r]
    xr = jnp.moveaxis(xr, 3, 1)                    # (B, stride, C, Lq_p)
    xr = jnp.pad(xr, ((0, 0), (0, 0), (0, Cp - C), (0, 0)))
    xr = xr.reshape(B, stride * Cp, Lq_p).astype(jnp.bfloat16)

    # --- per-tap weights (K, Op, Cp) bf16 and shift (Op, 1) f32 ---
    Wk = jnp.transpose(w_scaled, (2, 0, 1))                          # (K, O, C)
    Wk = jnp.pad(Wk, ((0, 0), (0, Op - O), (0, Cp - C))).astype(jnp.bfloat16)
    shift_p = jnp.pad(shift, (0, Op - O)).reshape(Op, 1).astype(jnp.float32)

    out = pl.pallas_call(
        partial(_convblock_kernel, Cp=Cp, Lp=Lp, taps=taps),
        out_shape=jax.ShapeDtypeStruct((B, Op, Lp), jnp.float32),
        grid_spec=pltpu.PrefetchScalarGridSpec(
            num_scalar_prefetch=0,
            grid=(B,),
            in_specs=[
                pl.BlockSpec((1, stride * Cp, Lq_p), lambda b: (b, 0, 0)),  # input, tiled over B
                pl.BlockSpec((K, Op, Cp), lambda b: (0, 0, 0)),             # weights, invariant
                pl.BlockSpec((Op, 1), lambda b: (0, 0)),                    # shift, invariant
            ],
            out_specs=pl.BlockSpec((1, Op, Lp), lambda b: (b, 0, 0)),
        ),
        compiler_params=pltpu.CompilerParams(dimension_semantics=("parallel",)),
    )(xr, Wk, shift_p)

    # --- drop channel/lane padding; layout is already (B, O, L_out) ---
    return out[:, :O, :L_out]


def ref_forward(x, wc, bc, gamma, beta, run_mean, run_var,
                *, stride=1, dilation=1, eps=1e-5):
    """Pure-JAX reference matching the PyTorch ConvBlock (BatchNorm in eval mode)."""
    L = x.shape[2]
    K = wc.shape[2]
    pad_total = (L - 1) * stride - L + dilation * (K - 1) + 1
    if pad_total % 2 != 0:
        x = jnp.pad(x, ((0, 0), (0, 0), (0, 1)))
    p = pad_total // 2
    y = jax.lax.conv_general_dilated(
        x, wc, window_strides=(stride,), padding=[(p, p)],
        rhs_dilation=(dilation,), dimension_numbers=("NCH", "OIH", "NCH"))
    y = y + bc[None, :, None]
    y = (y - run_mean[None, :, None]) / jnp.sqrt(run_var[None, :, None] + eps)
    y = y * gamma[None, :, None] + beta[None, :, None]
    return jax.nn.relu(y)


if __name__ == "__main__":
    B, C, L = 2, 4, 16
    key = jax.random.PRNGKey(0)

    # (out_channels, kernel_size, stride): covers even/odd same-padding, stride>1, O not /8.
    cases = [(8, 3, 1), (8, 3, 2), (6, 4, 1)]
    for (O, K, S) in cases:
        key, k0, k1, k2, k3, k4, k5, k6 = jax.random.split(key, 8)
        x = jax.random.normal(k0, (B, C, L), jnp.float32)
        wc = jax.random.normal(k1, (O, C, K), jnp.float32) * 0.1          # Conv1d weight
        bc = jax.random.normal(k2, (O,), jnp.float32) * 0.1               # Conv1d bias
        gamma = 1.0 + 0.1 * jax.random.normal(k3, (O,), jnp.float32)      # BN weight
        beta = 0.1 * jax.random.normal(k4, (O,), jnp.float32)             # BN bias
        run_mean = 0.1 * jax.random.normal(k5, (O,), jnp.float32)         # BN running mean
        run_var = jnp.abs(1.0 + 0.1 * jax.random.normal(k6, (O,), jnp.float32))  # BN running var

        out = convblock_forward(x, wc, bc, gamma, beta, run_mean, run_var, stride=S)
        out = jax.block_until_ready(out)
        ref = ref_forward(x, wc, bc, gamma, beta, run_mean, run_var, stride=S)

        assert out.shape == ref.shape == (B, O, L), (out.shape, ref.shape)
        # bf16 MXU operands, f32 accumulation -> loosened tolerance.
        assert jnp.allclose(out, ref, atol=2e-2, rtol=2e-2), (
            f"mismatch (O={O}, K={K}, stride={S}); "
            f"max_abs_err={float(jnp.max(jnp.abs(out - ref)))}")

    print("KERNEL_OK")
</pallas_src>

<mosaic_0001>
module attributes {stable_mosaic.version = 11 : i64} {
  func.func @_convblock_kernel(%arg0: i32, %arg1: memref<1x8x256xbf16, #tpu.memory_space<vmem>>, %arg2: memref<3x8x8xbf16, #tpu.memory_space<vmem>>, %arg3: memref<8x1xf32, #tpu.memory_space<vmem>>, %arg4: memref<1x8x128xf32, #tpu.memory_space<vmem>>) attributes {dimension_semantics = [#tpu.dimension_semantics<parallel>], iteration_bounds = array<i64: 2>, scalar_prefetch = 0 : i64, scratch_operands = 0 : i64, tpu.core_type = #tpu.core_type<tc>, window_params = [{transform_indices = @transform_0, window_bounds = array<i64: 1, 8, 256>}, {pipeline_mode = #tpu.pipeline_mode<synchronous>, transform_indices = @transform_1, window_bounds = array<i64: 3, 8, 8>}, {pipeline_mode = #tpu.pipeline_mode<synchronous>, transform_indices = @transform_2, window_bounds = array<i64: 8, 1>}, {transform_indices = @transform_3, window_bounds = array<i64: 1, 8, 128>}]} {
    %c0 = arith.constant 0 : index
    %c0_0 = arith.constant 0 : index
    %c0_1 = arith.constant 0 : index
    %0 = vector.load %arg1[%c0, %c0_0, %c0_1] : memref<1x8x256xbf16, #tpu.memory_space<vmem>>, vector<1x8x128xbf16>
    %1 = vector.shape_cast %0 : vector<1x8x128xbf16> to vector<8x128xbf16>
    %c0_2 = arith.constant 0 : index
    %c0_3 = arith.constant 0 : index
    %c0_4 = arith.constant 0 : index
    %2 = vector.load %arg2[%c0_2, %c0_3, %c0_4] : memref<3x8x8xbf16, #tpu.memory_space<vmem>>, vector<1x8x8xbf16>
    %3 = vector.shape_cast %2 : vector<1x8x8xbf16> to vector<8x8xbf16>
    %cst = arith.constant dense<0.000000e+00> : vector<8x128xf32>
    %4 = tpu.matmul %3, %1, %cst {dimension_numbers = #tpu.dot_dimension_numbers<[1], [0], [0], [1], [0, 0, 1, 1], [], []>} : vector<8x8xbf16>, vector<8x128xbf16>, vector<8x128xf32> -> vector<8x128xf32>
    %c0_5 = arith.constant 0 : index
    %c0_6 = arith.constant 0 : index
    %c1 = arith.constant 1 : index
    %5 = vector.load %arg1[%c0_5, %c0_6, %c1] : memref<1x8x256xbf16, #tpu.memory_space<vmem>>, vector<1x8x128xbf16>
    %6 = vector.shape_cast %5 : vector<1x8x128xbf16> to vector<8x128xbf16>
    %c1_7 = arith.constant 1 : index
    %c0_8 = arith.constant 0 : index
    %c0_9 = arith.constant 0 : index
    %7 = vector.load %arg2[%c1_7, %c0_8, %c0_9] : memref<3x8x8xbf16, #tpu.memory_space<vmem>>, vector<1x8x8xbf16>
    %8 = vector.shape_cast %7 : vector<1x8x8xbf16> to vector<8x8xbf16>
    %cst_10 = arith.constant dense<0.000000e+00> : vector<8x128xf32>
    %9 = tpu.matmul %8, %6, %cst_10 {dimension_numbers = #tpu.dot_dimension_numbers<[1], [0], [0], [1], [0, 0, 1, 1], [], []>} : vector<8x8xbf16>, vector<8x128xbf16>, vector<8x128xf32> -> vector<8x128xf32>
    %10 = arith.addf %4, %9 : vector<8x128xf32>
    %c0_11 = arith.constant 0 : index
    %c0_12 = arith.constant 0 : index
    %c2 = arith.constant 2 : index
    %11 = vector.load %arg1[%c0_11, %c0_12, %c2] : memref<1x8x256xbf16, #tpu.memory_space<vmem>>, vector<1x8x128xbf16>
    %12 = vector.shape_cast %11 : vector<1x8x128xbf16> to vector<8x128xbf16>
    %c2_13 = arith.constant 2 : index
    %c0_14 = arith.constant 0 : index
    %c0_15 = arith.constant 0 : index
    %13 = vector.load %arg2[%c2_13, %c0_14, %c0_15] : memref<3x8x8xbf16, #tpu.memory_space<vmem>>, vector<1x8x8xbf16>
    %14 = vector.shape_cast %13 : vector<1x8x8xbf16> to vector<8x8xbf16>
    %cst_16 = arith.constant dense<0.000000e+00> : vector<8x128xf32>
    %15 = tpu.matmul %14, %12, %cst_16 {dimension_numbers = #tpu.dot_dimension_numbers<[1], [0], [0], [1], [0, 0, 1, 1], [], []>} : vector<8x8xbf16>, vector<8x128xbf16>, vector<8x128xf32> -> vector<8x128xf32>
    %16 = arith.addf %10, %15 : vector<8x128xf32>
    %c0_17 = arith.constant 0 : index
    %c0_18 = arith.constant 0 : index
    %17 = vector.load %arg3[%c0_17, %c0_18] : memref<8x1xf32, #tpu.memory_space<vmem>>, vector<8x1xf32>
    %18 = vector.broadcast %17 : vector<8x1xf32> to vector<8x128xf32>
    %19 = arith.addf %16, %18 : vector<8x128xf32>
    %cst_19 = arith.constant 0.000000e+00 : f32
    %20 = vector.broadcast %cst_19 : f32 to vector<8x128xf32>
    %21 = arith.maximumf %19, %20 : vector<8x128xf32>
    %c0_20 = arith.constant 0 : index
    %c0_21 = arith.constant 0 : index
    %c0_22 = arith.constant 0 : index
    %22 = vector.load %arg4[%c0_20, %c0_21, %c0_22] : memref<1x8x128xf32, #tpu.memory_space<vmem>>, vector<1x8x128xf32>
    %23 = vector.shape_cast %22 : vector<1x8x128xf32> to vector<8x128xf32>
    %24 = vector.shape_cast %21 : vector<8x128xf32> to vector<1x8x128xf32>
    tpu.vector_store %arg4[%c0_20, %c0_21, %c0_22], %24 {strides = array<i32>} : memref<1x8x128xf32, #tpu.memory_space<vmem>>, vector<1x8x128xf32>,
    return
  }
  func.func @transform_0(%arg0: i32) -> (i32, i32, i32) {
    %c0_i32 = arith.constant 0 : i32
    %c0_i32_0 = arith.constant 0 : i32
    %c0_i32_1 = arith.constant 0 : i32
    return %arg0, %c0_i32, %c0_i32_0 : i32, i32, i32
  }
  func.func @transform_1(%arg0: i32) -> (i32, i32, i32) {
    %c0_i32 = arith.constant 0 : i32
    %c0_i32_0 = arith.constant 0 : i32
    %c0_i32_1 = arith.constant 0 : i32
    %c0_i32_2 = arith.constant 0 : i32
    return %c0_i32, %c0_i32_0, %c0_i32_1 : i32, i32, i32
  }
  func.func @transform_2(%arg0: i32) -> (i32, i32) {
    %c0_i32 = arith.constant 0 : i32
    %c0_i32_0 = arith.constant 0 : i32
    %c0_i32_1 = arith.constant 0 : i32
    return %c0_i32, %c0_i32_0 : i32, i32
  }
  func.func @transform_3(%arg0: i32) -> (i32, i32, i32) {
    %c0_i32 = arith.constant 0 : i32
    %c0_i32_0 = arith.constant 0 : i32
    %c0_i32_1 = arith.constant 0 : i32
    return %arg0, %c0_i32, %c0_i32_0 : i32, i32, i32
  }
}

</mosaic_0001>

<llo_original>
// kernel: tpu_custom_call.1
$region0: #{tpu_custom_call.1}
  #allocation0 [shape = 'u32[]', space=smem, size = 0x4, offset = 0x4, fixed_abs, tag = 'smem constant byte address 0x4 - core index']
  #allocation1 [shape = 'u32[144,128]{1,0:T(1,128)}', space=vmem, size = 0x12000, scoped, tag = 'internal scratch']
  %s0 = inlined_call_operand.hbm [shape: bf16[2,8,256], index: 0, kind: input, shape index: {}]
  %s1 = inlined_call_operand.vmem [shape: bf16[3,8,8], index: 1, kind: input, shape index: {}]
  %s2 = inlined_call_operand.vmem [shape: f32[8,1], index: 2, kind: input, shape index: {}]
  %s3 = inlined_call_operand.hbm [shape: f32[2,8,128], index: 3, kind: output, shape index: {}]
  %s4 = sld [smem:[#allocation0]]
  $region49: #{tpu_custom_call.1} parent=0
    _
  %s6 = ssub.s32 1, %s4
  %s7 = scalar_select 0, %s6, %s4
  $region1: #{tpu_custom_call.1} parent=0
    #allocation2 [shape = 'u8[8192]{0}', space=vmem, size = 0x2000, scoped, tag = 'input window, operand 0']
    #allocation3 [shape = 's32[2]{0}', space=sflag, size = 0x8, scoped, tag = 'scoped memory for tpu_custom_call.1']
    #allocation4 [shape = 's32[2]{0}', space=sflag, size = 0x8, scoped, tag = 'scoped memory for tpu_custom_call.1']
    #allocation5 [shape = 'u8[8192]{0}', space=vmem, size = 0x2000, scoped, tag = 'output window, operand 0']
    %8 = vsyncpa [#allocation3], 0
    %s9 = scalar_lea.sflag [#allocation3], 1
    %10 = vsyncpa %s9, 0
    %11 = vsyncpa [#allocation4], 0
    %s12 = scalar_lea.sflag [#allocation4], 1
    %13 = vsyncpa %s12, 0
    loop: start=0, step=1, limit=4
    $region2: #{tpu_custom_call.1} parent=1 // loop_pre_header
      _
    $region3: #{tpu_custom_call.1} parent=1 // loop_header
      %s15 = sphi 0, %s19
      %p16 = scmp.ge.s32.totalorder %s15, 4
      %s25 = sphi 0, %s27
      %s28 = sphi 0, %s25
      %s29 = sphi 0, %s28
      %s45 = sphi 0, %s29
      %s49 = sphi 0, %s49
      %s51 = sphi 0, %s49
      %s52 = sphi 0, %s51
      %s66 = sphi 0, %s52
      %s70 = sphi 0, %s70
      %s72 = sphi 0, %s70
      %s73 = sphi 0, %s72
      %s87 = sphi 0, %s73
      %s93 = sphi 0, %s95
      %s96 = sphi 0, %s93
      %s97 = sphi 0, %s96
      %s113 = sphi 0, %s97
    $region4: #{tpu_custom_call.1} parent=1 // loop_header_branch
      %18 = sbr.rel (%p16) target = $region8
    $region5: #{tpu_custom_call.1} parent=1 // loop_body
      %s20 = ssub.s32 %s15, 1
      %s21 = ssub.s32 %s15, 2
      %s22 = sadd.s32 %s15, 1
      %s23 = ssub.s32 %s15, %s22
      %p24 = scmp.eq.s32.totalorder %s23, 0
      %s26 = sadd.s32 %s25, 1
      %s27 = scalar_select %p24, %s25, %s26
      %p30 = pneg %p24
      %p31 = scmp.eq.s32.totalorder %s15, 1
      %p32 = por %p30, %p31
      %p33 = scmp.ne.s32.totalorder %s25, %s28
      %p34 = scmp.eq.s32.totalorder %s15, 0
      %p35 = por %p33, %p34
      %p36 = scmp.ne.s32.totalorder %s25, %s28
      %p37 = scmp.eq.s32.totalorder %s20, 1
      %p38 = por %p36, %p37
      %p39 = scmp.ne.s32.totalorder %s28, %s29
      %p40 = scmp.eq.s32.totalorder %s20, 0
      %p41 = por %p39, %p40
      %p42 = scmp.ne.s32.totalorder %s28, %s29
      %p43 = scmp.eq.s32.totalorder %s21, 1
      %p44 = por %p42, %p43
      %p46 = scmp.ne.s32.totalorder %s29, %s45
      %p47 = scmp.eq.s32.totalorder %s21, 0
      %p48 = por %p46, %p47
      %s50 = sadd.s32 %s49, 1
      %p53 = scmp.eq.s32.totalorder %s15, 1
      %p54 = scmp.ne.s32.totalorder %s49, %s51
      %p55 = scmp.eq.s32.totalorder %s15, 0
      %p56 = por %p54, %p55
      %p57 = scmp.ne.s32.totalorder %s49, %s51
      %p58 = scmp.eq.s32.totalorder %s20, 1
      %p59 = por %p57, %p58
      %p60 = scmp.ne.s32.totalorder %s51, %s52
      %p61 = scmp.eq.s32.totalorder %s20, 0
      %p62 = por %p60, %p61
      %p63 = scmp.ne.s32.totalorder %s51, %s52
      %p64 = scmp.eq.s32.totalorder %s21, 1
      %p65 = por %p63, %p64
      %p67 = scmp.ne.s32.totalorder %s52, %s66
      %p68 = scmp.eq.s32.totalorder %s21, 0
      %p69 = por %p67, %p68
      %s71 = sadd.s32 %s70, 1
      %p74 = scmp.eq.s32.totalorder %s15, 1
      %p75 = scmp.ne.s32.totalorder %s70, %s72
      %p76 = scmp.eq.s32.totalorder %s15, 0
      %p77 = por %p75, %p76
      %p78 = scmp.ne.s32.totalorder %s70, %s72
      %p79 = scmp.eq.s32.totalorder %s20, 1
      %p80 = por %p78, %p79
      %p81 = scmp.ne.s32.totalorder %s72, %s73
      %p82 = scmp.eq.s32.totalorder %s20, 0
      %p83 = por %p81, %p82
      %p84 = scmp.ne.s32.totalorder %s72, %s73
      %p85 = scmp.eq.s32.totalorder %s21, 1
      %p86 = por %p84, %p85
      %p88 = scmp.ne.s32.totalorder %s73, %s87
      %p89 = scmp.eq.s32.totalorder %s21, 0
      %p90 = por %p88, %p89
      %s91 = ssub.s32 %s15, %s22
      %p92 = scmp.eq.s32.totalorder %s91, 0
      %s94 = sadd.s32 %s93, 1
      %s95 = scalar_select %p92, %s93, %s94
      %p98 = pneg %p92
      %p99 = scmp.eq.s32.totalorder %s15, 1
      %p100 = por %p98, %p99
      %p101 = scmp.ne.s32.totalorder %s93, %s96
      %p102 = scmp.eq.s32.totalorder %s15, 0
      %p103 = por %p101, %p102
      %p104 = scmp.ne.s32.totalorder %s93, %s96
      %p105 = scmp.eq.s32.totalorder %s20, 1
      %p106 = por %p104, %p105
      %p107 = scmp.ne.s32.totalorder %s96, %s97
      %p108 = scmp.eq.s32.totalorder %s20, 0
      %p109 = por %p107, %p108
      %p110 = scmp.ne.s32.totalorder %s96, %s97
      %p111 = scmp.eq.s32.totalorder %s21, 1
      %p112 = por %p110, %p111
      %p114 = scmp.ne.s32.totalorder %s97, %s113
      %p115 = scmp.eq.s32.totalorder %s21, 0
      %p116 = por %p114, %p115
      %p117 = scmp.le.s32.totalorder 1, %s15
      %p118 = scmp.lt.s32.totalorder %s15, 3
      %p119 = pnand %p117, %p118
      %p120 = pneg %p119
      // Predicated region
      $region9: #{tpu_custom_call.1} parent=5 // pred_check
        _
      $region10: #{tpu_custom_call.1} parent=5 // pred_check_branch
        %122 = sbr.rel (%p119) target = $region12
      $region11: #{tpu_custom_call.1} parent=5 // pred_region
        %s123 = ssub.s32 %s15, 1
        // Predicated region
        $region13: #{tpu_custom_call.1} parent=11 // pred_check
          %p124 = pneg %p62
        $region14: #{tpu_custom_call.1} parent=11 // pred_check_branch
          %126 = sbr.rel (%p124) target = $region16
        $region15: #{tpu_custom_call.1} parent=11 // pred_region
          _
        $region16: #{tpu_custom_call.1} parent=11 // pred_fallthru
          _
        // Predicated region
        $region17: #{tpu_custom_call.1} parent=11 // pred_check
          %p127 = pneg %p83
        $region18: #{tpu_custom_call.1} parent=11 // pred_check_branch
          %129 = sbr.rel (%p127) target = $region20
        $region19: #{tpu_custom_call.1} parent=11 // pred_region
          _
        $region20: #{tpu_custom_call.1} parent=11 // pred_fallthru
          _
      $region12: #{tpu_custom_call.1} parent=5 // pred_fallthru
        _
      %p130 = scmp.lt.s32.totalorder %s15, 2
      // Predicated region
      $region21: #{tpu_custom_call.1} parent=5 // pred_check
        %p131 = pneg %p130
      $region22: #{tpu_custom_call.1} parent=5 // pred_check_branch
        %133 = sbr.rel (%p131) target = $region24
      $region23: #{tpu_custom_call.1} parent=5 // pred_region
        // Predicated region
        $region25: #{tpu_custom_call.1} parent=23 // pred_check
          %p134 = pneg %p35
        $region26: #{tpu_custom_call.1} parent=23 // pred_check_branch
          %136 = sbr.rel (%p134) target = $region28
        $region27: #{tpu_custom_call.1} parent=23 // pred_region
          %s137 = sand.u32 %s25, 1
          %s138 = scalar_lea.sflag [#allocation3], %s137
          %s139 = sand.u32 %s25, 1
          %s140 = smul.addr %s139, 8
          %s141 = scalar_lea.vmem [#allocation2], %s140
          %s143 = ssub.s32 128, 128
          %144 = vsyncadd %s138, %s143
          %s145 = smul.addr %s15, 2
          %s146 = smul.addr %s145, 64
          %s147 = scalar_lea.hbm %s0, %s146
          %s149 = sshll.u32 %s141, 4
          %s150 = int_to_ptr.vmem [resolvable:$true] %s149
          %152 = dma.hbm_to_vmem [thread:$0]  %s147, 128, %s150, %s138
        $region28: #{tpu_custom_call.1} parent=23 // pred_fallthru
          _
      $region24: #{tpu_custom_call.1} parent=5 // pred_fallthru
        _
      %p153 = scmp.le.s32.totalorder 1, %s15
      %p154 = scmp.lt.s32.totalorder %s15, 3
      %p155 = pnand %p153, %p154
      %p156 = pneg %p155
      // Predicated region
      $region29: #{tpu_custom_call.1} parent=5 // pred_check
        _
      $region30: #{tpu_custom_call.1} parent=5 // pred_check_branch
        %158 = sbr.rel (%p155) target = $region32
      $region31: #{tpu_custom_call.1} parent=5 // pred_region
        %s159 = ssub.s32 %s15, 1
        %s160 = sand.u32 %s28, 1
        %s161 = scalar_lea.sflag [#allocation3], %s160
        %s162 = sand.u32 %s28, 1
        %s163 = smul.addr %s162, 8
        %s164 = scalar_lea.vmem [#allocation2], %s163
        // Predicated region
        $region33: #{tpu_custom_call.1} parent=31 // pred_check
          %p165 = pneg %p41
        $region34: #{tpu_custom_call.1} parent=31 // pred_check_branch
          %167 = sbr.rel (%p165) target = $region36
        $region35: #{tpu_custom_call.1} parent=31 // pred_region
          %168 = dma.done %s161, 128
        $region36: #{tpu_custom_call.1} parent=31 // pred_fallthru
          _
        %s169 = sand.u32 %s28, 1
        %s170 = scalar_lea.sflag [#allocation3], %s169
        %s171 = sand.u32 %s28, 1
        %s172 = smul.addr %s171, 8
        %s173 = scalar_lea.vmem [#allocation2], %s172
        %p174 = pneg %p41
        %p175 = pneg %p38
        %p176 = pneg %p62
        %p177 = pneg %p59
        %p178 = pneg %p83
        %p179 = pneg %p80
        %p180 = pneg %p109
        %p181 = pneg %p106
        %s182 = sand.u32 %s96, 1
        %s183 = scalar_lea.sflag [#allocation4], %s182
        %s184 = sand.u32 %s96, 1
        %s185 = smul.addr %s184, 8
        %s186 = scalar_lea.vmem [#allocation5], %s185
        %v188 = vld [vmem:[%s164] sm:$0xf]
        %v189 = vld [vmem:[%s1] sm:$0xf]
        %v190 = vld [vmem:[%s164] sm:$0xff]
        %s191 = scalar_lea.vmem %s1, 4
        %v192 = vld [vmem:[%s191] sm:$0xf]
        %v194 = vunpack.c.l.b16 %v190
        %v195 = vunpack.c.h.b16 %v190
        %v196 = vpack.c.b16 %v194, %v194
        %v197 = vpack.c.b16 %v195, %v195
        %198 = vrot.lane.b32.xlu0 %v196, 127
        %v199 = vpop.permute.xlu0 %198
        %200 = vrot.lane.b32.xlu0 %v197, 127
        %v201 = vpop.permute.xlu0 %200
        %vm202 = vcmask 1039360
        %v203 = vsel %vm202, %v199, %v201
        %vm204 = vcmask 64512
        %v206 = vsel %vm204, %v192, 0
        %vm208 = vcmask 1043456
        %v210 = vsel %vm208, %v203, 0
        %212 = vmatprep.subr.bf16.mxu0 0
        %213 = vmatpush1.bf16.msra.mxu0 %v210
        %214 = vmatprep.subr.bf16.mxu0 0
        %215 = vmatpush1.bf16.msra.mxu0 0
        %216 = vmatprep.subr.bf16.mxu0 0
        %217 = vmatpush1.bf16.msra.mxu0 0
        %218 = vmatprep.subr.bf16.mxu0 0
        %219 = vmatpush1.bf16.msra.mxu0 0
        %220 = vmatprep.subr.bf16.mxu0 0
        %221 = vmatpush1.bf16.msra.mxu0 0
        %222 = vmatprep.subr.bf16.mxu0 0
        %223 = vmatpush1.bf16.msra.mxu0 0
        %224 = vmatprep.subr.bf16.mxu0 0
        %225 = vmatpush1.bf16.msra.mxu0 0
        %226 = vmatprep.subr.bf16.mxu0 0
        %227 = vmatpush1.bf16.msra.mxu0 0
        %228 = vmatprep.subr.bf16.mxu0 0
        %229 = vmatpush1.bf16.msra.mxu0 0
        %230 = vmatprep.subr.bf16.mxu0 0
        %231 = vmatpush1.bf16.msra.mxu0 0
        %232 = vmatprep.subr.bf16.mxu0 0
        %233 = vmatpush1.bf16.msra.mxu0 0
        %234 = vmatprep.subr.bf16.mxu0 0
        %235 = vmatpush1.bf16.msra.mxu0 0
        %236 = vmatprep.subr.bf16.mxu0 0
        %237 = vmatpush1.bf16.msra.mxu0 0
        %238 = vmatprep.subr.bf16.mxu0 0
        %239 = vmatpush1.bf16.msra.mxu0 0
        %240 = vmatprep.subr.bf16.mxu0 0
        %241 = vmatpush1.bf16.msra.mxu0 0
        %242 = vmatprep.subr.bf16.mxu0 0
        %243 = vmatpush1.bf16.msra.mxu0 0
        %244 = vmatprep.mubr.bf16.mxu0 0
        %245 = vmatmul.mubr.bf16.gmra.mrb[0].mxu0 %v206
        %v246 = vpop.f32.mrb[0].mxu0
        %v247 = vadd.f32 0.0, %v246
        %v248 = vpop.f32.mrb[0].mxu0
        %v249 = vpop.f32.mrb[0].mxu0
        %v250 = vpop.f32.mrb[0].mxu0
        %251 = vdwg.mxu0
        %v253 = vsel %vm204, %v189, 0
        %v256 = vsel %vm208, %v188, 0
        %258 = vmatprep.subr.bf16.mxu0 0
        %259 = vmatpush1.bf16.msra.mxu0 %v256
        %260 = vmatprep.subr.bf16.mxu0 0
        %261 = vmatpush1.bf16.msra.mxu0 0
        %262 = vmatprep.subr.bf16.mxu0 0
        %263 = vmatpush1.bf16.msra.mxu0 0
        %264 = vmatprep.subr.bf16.mxu0 0
        %265 = vmatpush1.bf16.msra.mxu0 0
        %266 = vmatprep.subr.bf16.mxu0 0
        %267 = vmatpush1.bf16.msra.mxu0 0
        %268 = vmatprep.subr.bf16.mxu0 0
        %269 = vmatpush1.bf16.msra.mxu0 0
        %270 = vmatprep.subr.bf16.mxu0 0
        %271 = vmatpush1.bf16.msra.mxu0 0
        %272 = vmatprep.subr.bf16.mxu0 0
        %273 = vmatpush1.bf16.msra.mxu0 0
        %274 = vmatprep.subr.bf16.mxu0 0
        %275 = vmatpush1.bf16.msra.mxu0 0
        %276 = vmatprep.subr.bf16.mxu0 0
        %277 = vmatpush1.bf16.msra.mxu0 0
        %278 = vmatprep.subr.bf16.mxu0 0
        %279 = vmatpush1.bf16.msra.mxu0 0
        %280 = vmatprep.subr.bf16.mxu0 0
        %281 = vmatpush1.bf16.msra.mxu0 0
        %282 = vmatprep.subr.bf16.mxu0 0
        %283 = vmatpush1.bf16.msra.mxu0 0
        %284 = vmatprep.subr.bf16.mxu0 0
        %285 = vmatpush1.bf16.msra.mxu0 0
        %286 = vmatprep.subr.bf16.mxu0 0
        %287 = vmatpush1.bf16.msra.mxu0 0
        %288 = vmatprep.subr.bf16.mxu0 0
        %289 = vmatpush1.bf16.msra.mxu0 0
        %290 = vmatprep.mubr.bf16.mxu0 0
        %291 = vmatmul.mubr.bf16.gmra.mrb[0].mxu0 %v253
        %v292 = vpop.f32.mrb[0].mxu0
        %v293 = vadd.f32 %v247, %v292
        %v294 = vpop.f32.mrb[0].mxu0
        %v295 = vpop.f32.mrb[0].mxu0
        %v296 = vpop.f32.mrb[0].mxu0
        %297 = vdwg.mxu0
        %s298 = scalar_lea.vmem %s1, 8
        %v299 = vld [vmem:[%s298] sm:$0xf]
        %300 = vrot.lane.b32.xlu0 %v196, 126
        %v301 = vpop.permute.xlu0 %300
        %302 = vrot.lane.b32.xlu0 %v197, 126
        %v303 = vpop.permute.xlu0 %302
        %vm304 = vcmask 1031168
        %v305 = vsel %vm304, %v301, %v303
        %v307 = vsel %vm204, %v299, 0
        %v310 = vsel %vm208, %v305, 0
        %312 = vmatprep.subr.bf16.mxu0 0
        %313 = vmatpush1.bf16.msra.mxu0 %v310
        %314 = vmatprep.subr.bf16.mxu0 0
        %315 = vmatpush1.bf16.msra.mxu0 0
        %316 = vmatprep.subr.bf16.mxu0 0
        %317 = vmatpush1.bf16.msra.mxu0 0
        %318 = vmatprep.subr.bf16.mxu0 0
        %319 = vmatpush1.bf16.msra.mxu0 0
        %320 = vmatprep.subr.bf16.mxu0 0
        %321 = vmatpush1.bf16.msra.mxu0 0
        %322 = vmatprep.subr.bf16.mxu0 0
        %323 = vmatpush1.bf16.msra.mxu0 0
        %324 = vmatprep.subr.bf16.mxu0 0
        %325 = vmatpush1.bf16.msra.mxu0 0
        %326 = vmatprep.subr.bf16.mxu0 0
        %327 = vmatpush1.bf16.msra.mxu0 0
        %328 = vmatprep.subr.bf16.mxu0 0
        %329 = vmatpush1.bf16.msra.mxu0 0
        %330 = vmatprep.subr.bf16.mxu0 0
        %331 = vmatpush1.bf16.msra.mxu0 0
        %332 = vmatprep.subr.bf16.mxu0 0
        %333 = vmatpush1.bf16.msra.mxu0 0
        %334 = vmatprep.subr.bf16.mxu0 0
        %335 = vmatpush1.bf16.msra.mxu0 0
        %336 = vmatprep.subr.bf16.mxu0 0
        %337 = vmatpush1.bf16.msra.mxu0 0
        %338 = vmatprep.subr.bf16.mxu0 0
        %339 = vmatpush1.bf16.msra.mxu0 0
        %340 = vmatprep.subr.bf16.mxu0 0
        %341 = vmatpush1.bf16.msra.mxu0 0
        %342 = vmatprep.subr.bf16.mxu0 0
        %343 = vmatpush1.bf16.msra.mxu0 0
        %344 = vmatprep.mubr.bf16.mxu0 0
        %345 = vmatmul.mubr.bf16.gmra.mrb[0].mxu0 %v307
        %v346 = vpop.f32.mrb[0].mxu0
        %v347 = vadd.f32 0.0, %v346
        %v348 = vpop.f32.mrb[0].mxu0
        %v349 = vpop.f32.mrb[0].mxu0
        %v350 = vpop.f32.mrb[0].mxu0
        %351 = vdwg.mxu0
        %v352 = vadd.f32 %v293, %v347
        %v353 = vld [vmem:[%s2] sm:$0xff]
        %355 = vset.pattern.permute.xlu0 0
        %356 = vperm.xlu0 %355, %v353
        %v357 = vpop.permute.xlu0 %356
        %v359 = vadd.f32 %v352, %v357
        %v360 = vmax.f32 %v359, 0.0
        %361 = vst [vmem:[%s186] sm:$0xff] %v360
        %s362 = sand.u32 %s96, 1
        %s363 = scalar_lea.sflag [#allocation4], %s362
        %s364 = sand.u32 %s96, 1
        %s365 = smul.addr %s364, 8
        %s366 = scalar_lea.vmem [#allocation5], %s365
        // Predicated region
        $region37: #{tpu_custom_call.1} parent=31 // pred_check
          %p367 = pneg %p106
        $region38: #{tpu_custom_call.1} parent=31 // pred_check_branch
          %369 = sbr.rel (%p367) target = $region40
        $region39: #{tpu_custom_call.1} parent=31 // pred_region
          %s371 = ssub.s32 128, 128
          %372 = vsyncadd %s363, %s371
          %s373 = smul.addr %s20, 128
          %s374 = scalar_lea.hbm %s3, %s373
          %s376 = sshll.u32 %s366, 4
          %s377 = int_to_ptr.vmem [resolvable:$true] %s376
          %379 = dma.vmem_to_hbm [thread:$0]  %s377, 128, %s374, %s363
        $region40: #{tpu_custom_call.1} parent=31 // pred_fallthru
          _
      $region32: #{tpu_custom_call.1} parent=5 // pred_fallthru
        _
      %p380 = scmp.le.s32.totalorder 2, %s15
      // Predicated region
      $region41: #{tpu_custom_call.1} parent=5 // pred_check
        %p381 = pneg %p380
      $region42: #{tpu_custom_call.1} parent=5 // pred_check_branch
        %383 = sbr.rel (%p381) target = $region44
      $region43: #{tpu_custom_call.1} parent=5 // pred_region
        %s384 = ssub.s32 %s15, 2
        // Predicated region
        $region45: #{tpu_custom_call.1} parent=43 // pred_check
          %p385 = pneg %p112
        $region46: #{tpu_custom_call.1} parent=43 // pred_check_branch
          %387 = sbr.rel (%p385) target = $region48
        $region47: #{tpu_custom_call.1} parent=43 // pred_region
          %s388 = sand.u32 %s97, 1
          %s389 = scalar_lea.sflag [#allocation4], %s388
          %s390 = sand.u32 %s97, 1
          %s391 = smul.addr %s390, 8
          %s392 = scalar_lea.vmem [#allocation5], %s391
          %393 = dma.done %s389, 128
        $region48: #{tpu_custom_call.1} parent=43 // pred_fallthru
          _
      $region44: #{tpu_custom_call.1} parent=5 // pred_fallthru
        _
    $region6: #{tpu_custom_call.1} parent=1 // loop_footer
      %s19 = sadd.s32 1, %s15
    $region7: #{tpu_custom_call.1} parent=1 // loop_footer_branch
      %14 = sbr.rel target = $region3
    $region8: #{tpu_custom_call.1} parent=1 // loop_exit
      _
    %394 = vsyncpa [#allocation3], 1
    %s395 = scalar_lea.sflag [#allocation3], 1
    %396 = vsyncpa %s395, 1
    %397 = vsyncpa [#allocation4], 1
    %s398 = scalar_lea.sflag [#allocation4], 1
    %399 = vsyncpa %s398, 1

</llo_original>
